<compile_context>
chip_gen: v7x
topology: tpu7x:2x2x1
jax: 0.10.0
libtpu: 0.0.40
codegen_flags: <defaults>
</compile_context>

<pallas_src>
import jax
import jax.numpy as jnp
from jax.experimental import pallas as pl
from jax.experimental.pallas import tpu as pltpu

IN_FEATURES = 6
OUT_FEATURES = 4
SUBLANES = 8  # f32 sublane count; batch is padded to a multiple of this


def _linear_softmax_kernel(p_ref, x_ref, o_ref):
    # p_ref: (8, 4)  rows 0..5 = W^T (6,4), row 6 = bias, row 7 unused
    # x_ref: (B, 6)  o_ref: (B, 4)
    x = x_ref[...]
    p = p_ref[...]

    # Linear on the VPU: z[b, o] = sum_i x[b, i] * W^T[i, o] + bias[o]
    z = p[IN_FEATURES:IN_FEATURES + 1, :]            # bias row, broadcasts over B
    for i in range(IN_FEATURES):                     # unrolled 6-term FMA chain
        z = z + x[:, i:i + 1] * p[i:i + 1, :]

    # Numerically stable softmax over the 4 outputs (lane axis), per row.
    m = jnp.max(z, axis=-1, keepdims=True)
    e = jnp.exp(z - m)
    denom = jnp.sum(e, axis=-1, keepdims=True)
    o_ref[...] = e * pl.reciprocal(denom, approx=False)


def pack_params(w, b):
    """Pack PyTorch-layout weight (4,6) and bias (4,) into one (8,4) f32 slab.

    Done once per parameter set, NOT per forward call (the transpose happens
    here, outside the hot path)."""
    slab = jnp.zeros((SUBLANES, OUT_FEATURES), jnp.float32)
    slab = slab.at[:IN_FEATURES, :].set(jnp.transpose(w).astype(jnp.float32))
    slab = slab.at[IN_FEATURES, :].set(b.astype(jnp.float32))
    return slab


def _call_kernel(packed_params, xb):
    bp = xb.shape[0]
    return pl.pallas_call(
        _linear_softmax_kernel,
        out_shape=jax.ShapeDtypeStruct((bp, OUT_FEATURES), jnp.float32),
        in_specs=[
            pl.BlockSpec(memory_space=pltpu.MemorySpace.VMEM),
            pl.BlockSpec(memory_space=pltpu.MemorySpace.VMEM),
        ],
        out_specs=pl.BlockSpec(memory_space=pltpu.MemorySpace.VMEM),
    )(packed_params, xb)


def neural_network_forward_batched(xb, packed_params):
    """xb: (B, 6) f32 -> (B, 4) f32; B independent robots, per-row softmax."""
    b = xb.shape[0]
    bp = max(SUBLANES, ((b + SUBLANES - 1) // SUBLANES) * SUBLANES)
    xb = xb.astype(jnp.float32)
    if bp != b:
        xb = jnp.pad(xb, ((0, bp - b), (0, 0)))
    out = _call_kernel(packed_params, xb)
    return out[:b]


def neural_network_forward(x, packed_params):
    """Single-sample forward matching the PyTorch module: (6,) -> (4,)."""
    xb = jnp.zeros((SUBLANES, IN_FEATURES), jnp.float32).at[0, :].set(
        x.astype(jnp.float32))
    out = _call_kernel(packed_params, xb)
    return out[0]


def init_params(key):
    """Deterministic init mimicking torch.nn.Linear(6, 4) default init."""
    kw, kb = jax.random.split(key)
    bound = 1.0 / jnp.sqrt(jnp.float32(IN_FEATURES))
    w = jax.random.uniform(kw, (OUT_FEATURES, IN_FEATURES),
                           minval=-bound, maxval=bound, dtype=jnp.float32)
    b = jax.random.uniform(kb, (OUT_FEATURES,),
                           minval=-bound, maxval=bound, dtype=jnp.float32)
    return w, b


if __name__ == "__main__":
    key = jax.random.PRNGKey(0)
    k_x, k_xb, k_p = jax.random.split(key, 3)

    w, b = init_params(k_p)
    packed = pack_params(w, b)   # one-time parameter packing

    # Single robot input (module semantics): flat vector of 6 sensor values.
    # TODO(synk): RobotInput.get() is a simulator accessor; modeled as a plain (6,) vector.
    x = jax.random.normal(k_x, (IN_FEATURES,), dtype=jnp.float32)
    y = neural_network_forward(x, packed)
    y = jax.block_until_ready(y)

    y_ref = jax.nn.softmax(w @ x + b, axis=0)
    assert y.shape == (OUT_FEATURES,)
    assert jnp.allclose(y, y_ref, atol=1e-5, rtol=1e-5)
    assert jnp.allclose(jnp.sum(y), 1.0, atol=1e-5)

    # Batched path (e.g. a CMA-ES population of robots), B = 8 = one sublane set.
    B = 8
    xb = jax.random.normal(k_xb, (B, IN_FEATURES), dtype=jnp.float32)
    yb = neural_network_forward_batched(xb, packed)
    yb = jax.block_until_ready(yb)

    yb_ref = jax.nn.softmax(xb @ w.T + b[None, :], axis=-1)
    assert yb.shape == (B, OUT_FEATURES)
    assert jnp.allclose(yb, yb_ref, atol=1e-5, rtol=1e-5)
    assert jnp.allclose(jnp.sum(yb, axis=-1), jnp.ones((B,)), atol=1e-5)

    print("KERNEL_OK")
</pallas_src>

<mosaic_0001>
module attributes {stable_mosaic.version = 11 : i64} {
  func.func @_linear_softmax_kernel(%arg0: memref<8x4xf32, #tpu.memory_space<vmem>>, %arg1: memref<8x6xf32, #tpu.memory_space<vmem>>, %arg2: memref<8x4xf32, #tpu.memory_space<vmem>>) attributes {dimension_semantics = [], scalar_prefetch = 0 : i64, scratch_operands = 0 : i64, tpu.core_type = #tpu.core_type<tc>} {
    %c0 = arith.constant 0 : index
    %c0_0 = arith.constant 0 : index
    %0 = vector.load %arg1[%c0, %c0_0] : memref<8x6xf32, #tpu.memory_space<vmem>>, vector<8x6xf32>
    %c0_1 = arith.constant 0 : index
    %c0_2 = arith.constant 0 : index
    %1 = vector.load %arg0[%c0_1, %c0_2] : memref<8x4xf32, #tpu.memory_space<vmem>>, vector<8x4xf32>
    %2 = vector.extract_strided_slice %1 {offsets = [6, 0], sizes = [1, 4], strides = [1, 1]} : vector<8x4xf32> to vector<1x4xf32>
    %3 = vector.extract_strided_slice %0 {offsets = [0, 0], sizes = [8, 1], strides = [1, 1]} : vector<8x6xf32> to vector<8x1xf32>
    %4 = vector.extract_strided_slice %1 {offsets = [0, 0], sizes = [1, 4], strides = [1, 1]} : vector<8x4xf32> to vector<1x4xf32>
    %5 = vector.broadcast %3 : vector<8x1xf32> to vector<8x4xf32>
    %6 = vector.broadcast %4 : vector<1x4xf32> to vector<8x4xf32>
    %7 = arith.mulf %5, %6 : vector<8x4xf32>
    %8 = vector.broadcast %2 : vector<1x4xf32> to vector<8x4xf32>
    %9 = arith.addf %8, %7 : vector<8x4xf32>
    %10 = vector.extract_strided_slice %0 {offsets = [0, 1], sizes = [8, 1], strides = [1, 1]} : vector<8x6xf32> to vector<8x1xf32>
    %11 = vector.extract_strided_slice %1 {offsets = [1, 0], sizes = [1, 4], strides = [1, 1]} : vector<8x4xf32> to vector<1x4xf32>
    %12 = vector.broadcast %10 : vector<8x1xf32> to vector<8x4xf32>
    %13 = vector.broadcast %11 : vector<1x4xf32> to vector<8x4xf32>
    %14 = arith.mulf %12, %13 : vector<8x4xf32>
    %15 = arith.addf %9, %14 : vector<8x4xf32>
    %16 = vector.extract_strided_slice %0 {offsets = [0, 2], sizes = [8, 1], strides = [1, 1]} : vector<8x6xf32> to vector<8x1xf32>
    %17 = vector.extract_strided_slice %1 {offsets = [2, 0], sizes = [1, 4], strides = [1, 1]} : vector<8x4xf32> to vector<1x4xf32>
    %18 = vector.broadcast %16 : vector<8x1xf32> to vector<8x4xf32>
    %19 = vector.broadcast %17 : vector<1x4xf32> to vector<8x4xf32>
    %20 = arith.mulf %18, %19 : vector<8x4xf32>
    %21 = arith.addf %15, %20 : vector<8x4xf32>
    %22 = vector.extract_strided_slice %0 {offsets = [0, 3], sizes = [8, 1], strides = [1, 1]} : vector<8x6xf32> to vector<8x1xf32>
    %23 = vector.extract_strided_slice %1 {offsets = [3, 0], sizes = [1, 4], strides = [1, 1]} : vector<8x4xf32> to vector<1x4xf32>
    %24 = vector.broadcast %22 : vector<8x1xf32> to vector<8x4xf32>
    %25 = vector.broadcast %23 : vector<1x4xf32> to vector<8x4xf32>
    %26 = arith.mulf %24, %25 : vector<8x4xf32>
    %27 = arith.addf %21, %26 : vector<8x4xf32>
    %28 = vector.extract_strided_slice %0 {offsets = [0, 4], sizes = [8, 1], strides = [1, 1]} : vector<8x6xf32> to vector<8x1xf32>
    %29 = vector.extract_strided_slice %1 {offsets = [4, 0], sizes = [1, 4], strides = [1, 1]} : vector<8x4xf32> to vector<1x4xf32>
    %30 = vector.broadcast %28 : vector<8x1xf32> to vector<8x4xf32>
    %31 = vector.broadcast %29 : vector<1x4xf32> to vector<8x4xf32>
    %32 = arith.mulf %30, %31 : vector<8x4xf32>
    %33 = arith.addf %27, %32 : vector<8x4xf32>
    %34 = vector.extract_strided_slice %0 {offsets = [0, 5], sizes = [8, 1], strides = [1, 1]} : vector<8x6xf32> to vector<8x1xf32>
    %35 = vector.extract_strided_slice %1 {offsets = [5, 0], sizes = [1, 4], strides = [1, 1]} : vector<8x4xf32> to vector<1x4xf32>
    %36 = vector.broadcast %34 : vector<8x1xf32> to vector<8x4xf32>
    %37 = vector.broadcast %35 : vector<1x4xf32> to vector<8x4xf32>
    %38 = arith.mulf %36, %37 : vector<8x4xf32>
    %39 = arith.addf %33, %38 : vector<8x4xf32>
    %cst = arith.constant dense<0xFF800000> : vector<8xf32>
    %40 = vector.multi_reduction <maximumf>, %39, %cst [1] : vector<8x4xf32> to vector<8xf32>
    %41 = vector.shape_cast %40 : vector<8xf32> to vector<8x1xf32>
    %42 = vector.broadcast %41 : vector<8x1xf32> to vector<8x4xf32>
    %43 = arith.subf %39, %42 : vector<8x4xf32>
    %44 = math.exp %43 : vector<8x4xf32>
    %cst_3 = arith.constant dense<0.000000e+00> : vector<8xf32>
    %45 = vector.multi_reduction <add>, %44, %cst_3 [1] : vector<8x4xf32> to vector<8xf32>
    %46 = vector.shape_cast %45 : vector<8xf32> to vector<8x1xf32>
    %47 = tpu.reciprocal %46 : vector<8x1xf32> -> vector<8x1xf32>
    %48 = vector.broadcast %47 : vector<8x1xf32> to vector<8x4xf32>
    %49 = arith.mulf %44, %48 : vector<8x4xf32>
    %c0_4 = arith.constant 0 : index
    %c0_5 = arith.constant 0 : index
    %50 = vector.load %arg2[%c0_4, %c0_5] : memref<8x4xf32, #tpu.memory_space<vmem>>, vector<8x4xf32>
    tpu.vector_store %arg2[%c0_4, %c0_5], %49 {strides = array<i32>} : memref<8x4xf32, #tpu.memory_space<vmem>>, vector<8x4xf32>,
    return
  }
}

</mosaic_0001>

<llo_original>
// kernel: tpu_custom_call.1
$region0: #{tpu_custom_call.1}
  #allocation0 [shape = 'u32[]', space=smem, size = 0x4, offset = 0x4, fixed_abs, tag = 'smem constant byte address 0x4 - core index']
  #allocation1 [shape = 'u32[144,128]{1,0:T(1,128)}', space=vmem, size = 0x12000, scoped, tag = 'internal scratch']
  %s0 = inlined_call_operand.vmem [shape: f32[8,4], index: 0, kind: input, shape index: {}]
  %s1 = inlined_call_operand.vmem [shape: f32[8,6], index: 1, kind: input, shape index: {}]
  %s2 = inlined_call_operand.vmem [shape: f32[8,4], index: 2, kind: output, shape index: {}]
  %s3 = sld [smem:[#allocation0]]
  $region18: #{tpu_custom_call.1} parent=0
    _
  %s5 = ssub.s32 1, %s3
  %s6 = scalar_select 0, %s5, %s3
  // Predicated region
  $region2: #{tpu_custom_call.1} parent=0 // pred_check
    _
  $region3: #{tpu_custom_call.1} parent=0 // pred_check_branch
    %8 = sbr.rel (0) target = $region5
  $region4: #{tpu_custom_call.1} parent=0 // pred_region
    _
  $region5: #{tpu_custom_call.1} parent=0 // pred_fallthru
    _
  // Predicated region
  $region6: #{tpu_custom_call.1} parent=0 // pred_check
    _
  $region7: #{tpu_custom_call.1} parent=0 // pred_check_branch
    %10 = sbr.rel (0) target = $region9
  $region8: #{tpu_custom_call.1} parent=0 // pred_region
    _
  $region9: #{tpu_custom_call.1} parent=0 // pred_fallthru
    _
  %v11 = vld [vmem:[%s1] sm:$0xff]
  %v12 = vld [vmem:[%s0] sm:$0xff]
  %14 = vset.pattern.permute.xlu0 0
  %15 = vperm.xlu0 %14, %v11
  %v16 = vpop.permute.xlu0 %15
  %v18 = vlaneseq
  %v19 = vshrl.u32 %v18, 7
  %v20 = vsub.s32 0, %v19
  %v21 = vrot.slane %v12, %v20
  %v22 = vmul.f32 %v16, %v21
  %v23 = vlaneseq
  %v24 = vshrl.u32 %v23, 7
  %v25 = vsub.s32 6, %v24
  %v26 = vrot.slane %v12, %v25
  %v27 = vadd.f32 %v26, %v22
  %28 = vset.pattern.permute.xlu0 1
  %29 = vperm.xlu0 %28, %v11
  %v30 = vpop.permute.xlu0 %29
  %v32 = vlaneseq
  %v33 = vshrl.u32 %v32, 7
  %v34 = vsub.s32 1, %v33
  %v35 = vrot.slane %v12, %v34
  %v36 = vmul.f32 %v30, %v35
  %v37 = vadd.f32 %v27, %v36
  %38 = vset.pattern.permute.xlu0 2
  %39 = vperm.xlu0 %38, %v11
  %v40 = vpop.permute.xlu0 %39
  %v42 = vlaneseq
  %v43 = vshrl.u32 %v42, 7
  %v44 = vsub.s32 2, %v43
  %v45 = vrot.slane %v12, %v44
  %v46 = vmul.f32 %v40, %v45
  %v47 = vadd.f32 %v37, %v46
  %48 = vset.pattern.permute.xlu0 3
  %49 = vperm.xlu0 %48, %v11
  %v50 = vpop.permute.xlu0 %49
  %v52 = vlaneseq
  %v53 = vshrl.u32 %v52, 7
  %v54 = vsub.s32 3, %v53
  %v55 = vrot.slane %v12, %v54
  %v56 = vmul.f32 %v50, %v55
  %v57 = vadd.f32 %v47, %v56
  %58 = vset.pattern.permute.xlu0 4
  %59 = vperm.xlu0 %58, %v11
  %v60 = vpop.permute.xlu0 %59
  %v62 = vlaneseq
  %v63 = vshrl.u32 %v62, 7
  %v64 = vsub.s32 4, %v63
  %v65 = vrot.slane %v12, %v64
  %v66 = vmul.f32 %v60, %v65
  %v67 = vadd.f32 %v57, %v66
  %68 = vset.pattern.permute.xlu0 5
  %69 = vperm.xlu0 %68, %v11
  %v70 = vpop.permute.xlu0 %69
  %v72 = vlaneseq
  %v73 = vshrl.u32 %v72, 7
  %v74 = vsub.s32 5, %v73
  %v75 = vrot.slane %v12, %v74
  %v76 = vmul.f32 %v70, %v75
  %v77 = vadd.f32 %v67, %v76
  %vm78 = vcmask 31744
  %v79 = vsel %vm78, %v77, -inf
  %80 = vmax.xlane.f32.xlu0 %v79
  %v81 = vpop.xlane.xlu0 %80
  %v82 = vsub.f32 %v77, %v81
  %v83 = vmul.f32 %v82, 1.442695
  %v84 = vpow.pop %v83
  %v85 = vsel %vm78, %v84, 0.0
  %86 = vadd.xlane.f32.xlu0 %v85
  %v87 = vpop.xlane.xlu0 %86
  %v88 = vrcp.pop %v87
  %v89 = vmul.f32 %v84, %v88
  %90 = vst.msk [vmem:[%s2] sm:$0xff] %vm78, %v89
  // Predicated region
  $region10: #{tpu_custom_call.1} parent=0 // pred_check
    _
  $region11: #{tpu_custom_call.1} parent=0 // pred_check_branch
    %92 = sbr.rel (0) target = $region13
  $region12: #{tpu_custom_call.1} parent=0 // pred_region
    _
  $region13: #{tpu_custom_call.1} parent=0 // pred_fallthru
    _
  // Predicated region
  $region14: #{tpu_custom_call.1} parent=0 // pred_check
    _
  $region15: #{tpu_custom_call.1} parent=0 // pred_check_branch
    %94 = sbr.rel (0) target = $region17
  $region16: #{tpu_custom_call.1} parent=0 // pred_region
    _
  $region17: #{tpu_custom_call.1} parent=0 // pred_fallthru
    _

</llo_original>
